<compile_context>
chip_gen: v6e
topology: v6e:2x2x1
jax: 0.10.0
libtpu: 0.0.40
codegen_flags: <defaults>
</compile_context>

<pallas_src>
import jax
import jax.numpy as jnp
from jax.experimental import pallas as pl
from jax.experimental.pallas import tpu as pltpu


def _round_up(x: int, m: int) -> int:
    return ((x + m - 1) // m) * m


def _vmem_budget():
    """Returns (X-block byte budget, scoped VMEM limit) per TPU generation."""
    try:
        vmem_bytes = pltpu.get_tpu_info().vmem_capacity_bytes
    except Exception:  # be conservative (v7x-safe) if the query is unavailable
        vmem_bytes = 64 * 1024 * 1024
    if vmem_bytes >= 100 * 1024 * 1024:
        # v5e / v6e: 128 MiB VMEM per TensorCore -> ~32 MiB blocks, 100 MiB scoped.
        return 32 * 1024 * 1024, 100 * 1024 * 1024
    # v7x: 64 MiB VMEM per TensorCore -> ~16 MiB blocks, 48 MiB scoped.
    return 16 * 1024 * 1024, 48 * 1024 * 1024


def _linreg_kernel(b_ref, x_ref, w_ref, o_ref):
    # b_ref: SMEM (1,)        -- bias scalar
    # x_ref: VMEM (TILE_N, D) -- streamed / double-buffered X row block
    # w_ref: VMEM (1, D)      -- full weight row, resident across grid steps
    # o_ref: VMEM (TILE_N, 1)
    prod = x_ref[...] * w_ref[...]                        # VPU, f32
    o_ref[...] = (jnp.sum(prod, axis=1, keepdims=True)    # one XLU reduce / tile
                  + b_ref[0]).astype(o_ref.dtype)


def linear_regression_forward(x, weight, bias, *, tile_n_max=8192,
                              force_pallas=False, min_pallas_bytes=1 << 20):
    """x: (N, D) f32, weight: (1, D) (torch nn.Linear layout), bias: (1,)."""
    N, D = x.shape
    assert weight.shape == (1, D) and bias.shape == (1,)
    # f32-only: the 8-sublane row tiling and the f32 reduce below assume it.
    assert x.dtype == jnp.float32 and weight.dtype == jnp.float32
    assert bias.dtype == jnp.float32

    def xla_fallback():
        return x @ weight.T + bias

    # Tiny inputs: fixed pallas_call launch + per-grid-step overhead dominates;
    # a plain dot is strictly faster.
    if not force_pallas and N * D * 4 < min_pallas_bytes:
        return xla_fallback()

    block_budget, vmem_limit = _vmem_budget()

    # Row tile: as many rows as fit the per-generation block budget at full
    # feature width; multiple of 8 sublanes; capped by tile_n_max.
    rows_cap = max(8, (block_budget // (D * 4)) // 8 * 8)
    rows_cap = min(rows_cap, tile_n_max)
    n_tiles = pl.cdiv(N, rows_cap)
    # Megacore (v7x): ensure the "parallel" row axis has >= 2 tiles when there
    # is enough work, so both TensorCores stream X concurrently.
    if n_tiles < 2 and N >= 256:
        n_tiles = 2
    if n_tiles == 1:
        tile_n = N  # a block dim equal to the full array dim is always legal
    else:
        tile_n = _round_up(pl.cdiv(N, n_tiles), 8)
        n_tiles = pl.cdiv(N, tile_n)

    # Pathologically wide feature dim: even an 8-row double-buffered block
    # would not fit VMEM.
    # TODO(synk): add a K-tiled reduction path (lane-dense accumulator) for it.
    if 2 * tile_n * D * 4 + D * 4 > vmem_limit:
        return xla_fallback()

    return pl.pallas_call(
        _linreg_kernel,
        out_shape=jax.ShapeDtypeStruct((N, 1), x.dtype),
        grid=(n_tiles,),
        in_specs=[
            pl.BlockSpec(memory_space=pltpu.SMEM),          # bias scalar
            pl.BlockSpec((tile_n, D), lambda i: (i, 0)),    # X row block (streamed)
            pl.BlockSpec((1, D), lambda i: (0, 0)),         # weight row (resident)
        ],
        out_specs=pl.BlockSpec((tile_n, 1), lambda i: (i, 0)),
        compiler_params=pltpu.CompilerParams(
            dimension_semantics=("parallel",),
            vmem_limit_bytes=vmem_limit,
        ),
        cost_estimate=pl.CostEstimate(
            flops=2 * N * D,
            transcendentals=0,
            bytes_accessed=4 * (N * D + D + N),
        ),
    )(bias, x, weight)


if __name__ == "__main__":
    key = jax.random.PRNGKey(0)
    k_x, k_w, k_x2, k_w2 = jax.random.split(key, 4)

    # Demo shapes consistent with LazyLinear(1): batch=16, features=32.
    N, D = 16, 32
    x = jax.random.normal(k_x, (N, D), dtype=jnp.float32)
    # torch: weight.data.normal_(0, 0.01); bias.data.fill_(0)
    weight = 0.01 * jax.random.normal(k_w, (1, D), dtype=jnp.float32)
    bias = jnp.zeros((1,), dtype=jnp.float32)
    y_ref = x @ weight.T + bias

    # 1) Pallas path (forced: the tiny demo shape would otherwise take the
    #    small-shape XLA fallback that exists purely for launch-overhead reasons).
    y = jax.block_until_ready(
        linear_regression_forward(x, weight, bias, force_pallas=True))
    assert y.shape == (N, 1)
    assert jnp.allclose(y, y_ref, atol=1e-5, rtol=1e-5)

    # 2) Auto path (exercises the small-shape XLA fallback).
    y_auto = jax.block_until_ready(linear_regression_forward(x, weight, bias))
    assert jnp.allclose(y_auto, y_ref, atol=1e-5, rtol=1e-5)

    # 3) Ragged multi-tile Pallas path: N not a multiple of the row tile and
    #    several grid steps, validating boundary-block handling (no padding).
    N2, D2 = 300, 72
    x2 = jax.random.normal(k_x2, (N2, D2), dtype=jnp.float32)
    w2 = 0.01 * jax.random.normal(k_w2, (1, D2), dtype=jnp.float32)
    y2 = jax.block_until_ready(
        linear_regression_forward(x2, w2, bias, force_pallas=True, tile_n_max=128))
    y2_ref = x2 @ w2.T + bias
    assert y2.shape == (N2, 1)
    assert jnp.allclose(y2, y2_ref, atol=1e-5, rtol=1e-5)

    print("KERNEL_OK")
</pallas_src>

<mosaic_0001>
module attributes {stable_mosaic.version = 11 : i64} {
  func.func @_linreg_kernel(%arg0: i32, %arg1: memref<1xf32, #tpu.memory_space<smem>>, %arg2: memref<16x32xf32, #tpu.memory_space<vmem>>, %arg3: memref<1x32xf32, #tpu.memory_space<vmem>>, %arg4: memref<16x1xf32, #tpu.memory_space<vmem>>) attributes {dimension_semantics = [#tpu.dimension_semantics<parallel>], iteration_bounds = array<i64: 1>, scalar_prefetch = 0 : i64, scratch_operands = 0 : i64, tpu.core_type = #tpu.core_type<tc>, window_params = [{transform_indices = @transform_0, window_bounds = array<i64: 1>}, {transform_indices = @transform_1, window_bounds = array<i64: 16, 32>}, {pipeline_mode = #tpu.pipeline_mode<synchronous>, transform_indices = @transform_2, window_bounds = array<i64: 1, 32>}, {transform_indices = @transform_3, window_bounds = array<i64: 16, 1>}]} {
    %c0 = arith.constant 0 : index
    %c0_0 = arith.constant 0 : index
    %0 = vector.load %arg2[%c0, %c0_0] : memref<16x32xf32, #tpu.memory_space<vmem>>, vector<16x32xf32>
    %c0_1 = arith.constant 0 : index
    %c0_2 = arith.constant 0 : index
    %1 = vector.load %arg3[%c0_1, %c0_2] : memref<1x32xf32, #tpu.memory_space<vmem>>, vector<1x32xf32>
    %2 = vector.broadcast %1 : vector<1x32xf32> to vector<16x32xf32>
    %3 = arith.mulf %0, %2 : vector<16x32xf32>
    %cst = arith.constant dense<0.000000e+00> : vector<16xf32>
    %4 = vector.multi_reduction <add>, %3, %cst [1] : vector<16x32xf32> to vector<16xf32>
    %5 = vector.shape_cast %4 : vector<16xf32> to vector<16x1xf32>
    %c0_3 = arith.constant 0 : index
    %6 = memref.load %arg1[%c0_3] : memref<1xf32, #tpu.memory_space<smem>>
    %7 = vector.broadcast %6 : f32 to vector<16x1xf32>
    %8 = arith.addf %5, %7 : vector<16x1xf32>
    %c0_4 = arith.constant 0 : index
    %c0_5 = arith.constant 0 : index
    %9 = vector.load %arg4[%c0_4, %c0_5] : memref<16x1xf32, #tpu.memory_space<vmem>>, vector<16x1xf32>
    tpu.vector_store %arg4[%c0_4, %c0_5], %8 {strides = array<i32>} : memref<16x1xf32, #tpu.memory_space<vmem>>, vector<16x1xf32>,
    return
  }
  func.func @transform_0(%arg0: i32) -> i32 {
    %c0_i32 = arith.constant 0 : i32
    %c0_i32_0 = arith.constant 0 : i32
    return %c0_i32 : i32
  }
  func.func @transform_1(%arg0: i32) -> (i32, i32) {
    %c0_i32 = arith.constant 0 : i32
    %c0_i32_0 = arith.constant 0 : i32
    return %arg0, %c0_i32 : i32, i32
  }
  func.func @transform_2(%arg0: i32) -> (i32, i32) {
    %c0_i32 = arith.constant 0 : i32
    %c0_i32_0 = arith.constant 0 : i32
    %c0_i32_1 = arith.constant 0 : i32
    return %c0_i32, %c0_i32_0 : i32, i32
  }
  func.func @transform_3(%arg0: i32) -> (i32, i32) {
    %c0_i32 = arith.constant 0 : i32
    %c0_i32_0 = arith.constant 0 : i32
    return %arg0, %c0_i32 : i32, i32
  }
}

</mosaic_0001>

<llo_original>
// kernel: tpu_custom_call.1
$region0: #{tpu_custom_call.1}
  #allocation0 [shape = 'u32[]', space=smem, size = 0x4, offset = 0x4, fixed_abs, tag = 'smem constant byte address 0x4 - core index']
  #allocation1 [shape = 'u32[144,128]{1,0:T(1,128)}', space=vmem, size = 0x12000, scoped, tag = 'internal scratch']
  #allocation2 [shape = 'f32[1]{0:T(128)S(6)}', space=smem, size = 0x200, scoped, tag = 'scoped memory for tpu_custom_call.1']
  %s0 = inlined_call_operand.<no memory space> [shape: f32[1], index: 0, kind: input, shape index: {}]
  %s1 = inlined_call_operand.hbm [shape: f32[16,32], index: 1, kind: input, shape index: {}]
  %s2 = inlined_call_operand.vmem [shape: f32[1,32], index: 2, kind: input, shape index: {}]
  %s3 = inlined_call_operand.vmem [shape: f32[16,1], index: 3, kind: output, shape index: {}]
  %s4 = sld [smem:[#allocation0]]
  $region26: #{tpu_custom_call.1} parent=0
    _
  %s6 = ssub.s32 1, %s4
  %s7 = scalar_select 0, %s6, %s4
  %8 = sst [smem:[#allocation2]] %s0
  $region1: #{tpu_custom_call.1} parent=0
    #allocation3 [shape = 'u8[8192]{0}', space=vmem, size = 0x2000, scoped, tag = 'input window, operand 1, single buffered']
    #allocation4 [shape = 's32[1]{0}', space=sflag, size = 0x4, scoped, tag = 'scoped memory for tpu_custom_call.1']
    %9 = vsyncpa [#allocation4], 0
    // Predicated region
    $region2: #{tpu_custom_call.1} parent=1 // pred_check
      _
    $region3: #{tpu_custom_call.1} parent=1 // pred_check_branch
      %11 = sbr.rel (0) target = $region5
    $region4: #{tpu_custom_call.1} parent=1 // pred_region
      _
    $region5: #{tpu_custom_call.1} parent=1 // pred_fallthru
      _
    // Predicated region
    $region6: #{tpu_custom_call.1} parent=1 // pred_check
      _
    $region7: #{tpu_custom_call.1} parent=1 // pred_check_branch
      %13 = sbr.rel (0) target = $region9
    $region8: #{tpu_custom_call.1} parent=1 // pred_region
      %s15 = ssub.s32 256, 256
      %16 = vsyncadd [#allocation4], %s15
      %s17 = sshll.u32 [#allocation3], 4
      %s18 = int_to_ptr.vmem [resolvable:$true] %s17
      %23 = dma.hbm_to_vmem [thread:$0]  %s1, 256, %s18, [#allocation4], 128, 128, 8
    $region9: #{tpu_custom_call.1} parent=1 // pred_fallthru
      _
    // Predicated region
    $region10: #{tpu_custom_call.1} parent=1 // pred_check
      _
    $region11: #{tpu_custom_call.1} parent=1 // pred_check_branch
      %25 = sbr.rel (0) target = $region13
    $region12: #{tpu_custom_call.1} parent=1 // pred_region
      _
    $region13: #{tpu_custom_call.1} parent=1 // pred_fallthru
      _
    // Predicated region
    $region14: #{tpu_custom_call.1} parent=1 // pred_check
      _
    $region15: #{tpu_custom_call.1} parent=1 // pred_check_branch
      %27 = sbr.rel (0) target = $region17
    $region16: #{tpu_custom_call.1} parent=1 // pred_region
      %28 = dma.done [#allocation4], 256
    $region17: #{tpu_custom_call.1} parent=1 // pred_fallthru
      _
    %v29 = vld [vmem:[#allocation3] sm:$0xff]
    %v30 = vld [vmem:[#allocation3 + $0x8] sm:$0xff]
    %v31 = vld [vmem:[%s2] sm:$0x1]
    %v33 = vlaneseq
    %v34 = vshrl.u32 %v33, 7
    %v35 = vsub.s32 0, %v34
    %v36 = vrot.slane %v31, %v35
    %v38 = vmul.f32 %v29, %v36
    %v39 = vmul.f32 %v30, %v36
    %vm40 = vcmask 261120
    %v41 = vsel %vm40, %v38, 0.0
    %42 = vadd.xlane.f32.xlu0 %v41
    %v43 = vpop.xlane.xlu0 %42
    %v44 = vsel %vm40, %v39, 0.0
    %45 = vadd.xlane.f32.xlu0 %v44
    %v46 = vpop.xlane.xlu0 %45
    %s47 = sld [smem:[#allocation2]]
    %v48 = vstv %s47
    %v49 = vadd.f32 %v43, %v48
    %v50 = vadd.f32 %v46, %v48
    %vm51 = vcmask 7168
    %52 = vst.msk [vmem:[%s3] sm:$0xff] %vm51, %v49
    %53 = vst.msk [vmem:[%s3 + $0x8] sm:$0xff] %vm51, %v50
    // Predicated region
    $region18: #{tpu_custom_call.1} parent=1 // pred_check
      _
    $region19: #{tpu_custom_call.1} parent=1 // pred_check_branch
      %55 = sbr.rel (0) target = $region21
    $region20: #{tpu_custom_call.1} parent=1 // pred_region
      _
    $region21: #{tpu_custom_call.1} parent=1 // pred_fallthru
      _
    // Predicated region
    $region22: #{tpu_custom_call.1} parent=1 // pred_check
      _
    $region23: #{tpu_custom_call.1} parent=1 // pred_check_branch
      %57 = sbr.rel (0) target = $region25
    $region24: #{tpu_custom_call.1} parent=1 // pred_region
      _
    $region25: #{tpu_custom_call.1} parent=1 // pred_fallthru
      _
    %58 = vsyncpa [#allocation4], 1

</llo_original>
